<compile_context>
chip_gen: v6e
topology: v6e:2x2x1
jax: 0.10.0
libtpu: 0.0.40
codegen_flags: <defaults>
</compile_context>

<pallas_src>
import jax
import jax.numpy as jnp
from jax.experimental import pallas as pl
from jax.experimental.pallas import tpu as pltpu


def _round_up(x, m):
    return ((x + m - 1) // m) * m


def _actor_kernel(s_ref, w1_ref, b1_ref, w2_ref, b2_ref, w3_ref, b3_ref, out_ref):
    # Layer 1: Linear(state_dim, 64) + ReLU.  Matmul inputs may be bf16; accumulate in f32.
    h1 = jnp.dot(s_ref[...], w1_ref[...], preferred_element_type=jnp.float32)
    h1 = jnp.maximum(h1 + b1_ref[...], 0.0)

    # Layer 2: Linear(64, 32) + tanh.  Elementwise stays f32 (v5e has no bf16 VPU/EUP).
    h2 = jnp.dot(h1.astype(w2_ref.dtype), w2_ref[...], preferred_element_type=jnp.float32)
    h2 = jnp.tanh(h2 + b2_ref[...])

    # Output: Linear(32, padded_action_dim) + sigmoid; 128-lane-dense full store.
    h3 = jnp.dot(h2.astype(w3_ref.dtype), w3_ref[...], preferred_element_type=jnp.float32)
    out_ref[...] = jax.nn.sigmoid(h3 + b3_ref[...]).astype(out_ref.dtype)


def actor_forward(s, params, *, tile_batch=512, use_bf16=True):
    """s: [batch, state_dim] float32; params: dict of [in, out] weights and [1, out] biases."""
    w1, b1, w2, b2, w3, b3 = (
        params["w1"], params["b1"], params["w2"],
        params["b2"], params["w3"], params["b3"],
    )
    batch, state_dim = s.shape
    action_dim = w3.shape[1]

    # Lane-dense output: zero-pad the last layer to a multiple of 128 output lanes.
    out_pad = _round_up(max(action_dim, 1), 128)
    w3p = jnp.zeros((w3.shape[0], out_pad), w3.dtype).at[:, :action_dim].set(w3)
    b3p = jnp.zeros((1, out_pad), b3.dtype).at[:, :action_dim].set(b3)

    # Batch tile: multiple of 8 sublanes, capped at 512 rows (sweet spot for pipelining).
    tb = min(tile_batch, _round_up(batch, 8))
    padded_batch = _round_up(batch, tb)
    if padded_batch != batch:
        s = jnp.pad(s, ((0, padded_batch - batch), (0, 0)))

    # bf16 matmul inputs on the MXU (v6e/v7x native); biases stay f32.
    mm_dtype = jnp.bfloat16 if use_bf16 else jnp.float32
    s_c = s.astype(mm_dtype)
    w1_c = w1.astype(mm_dtype)
    w2_c = w2.astype(mm_dtype)
    w3_c = w3p.astype(mm_dtype)

    # Weights/biases: full-array blocks with a constant index_map -> VMEM-resident
    # across all batch tiles (no re-fetch per grid step).
    resident = lambda a: pl.BlockSpec(a.shape, lambda i: (0, 0))

    out = pl.pallas_call(
        _actor_kernel,
        out_shape=jax.ShapeDtypeStruct((padded_batch, out_pad), jnp.float32),
        grid=(padded_batch // tb,),
        in_specs=[
            pl.BlockSpec((tb, state_dim), lambda i: (i, 0)),  # streamed batch tiles
            resident(w1_c), resident(b1),
            resident(w2_c), resident(b2),
            resident(w3_c), resident(b3p),
        ],
        out_specs=pl.BlockSpec((tb, out_pad), lambda i: (i, 0)),
        compiler_params=pltpu.CompilerParams(
            dimension_semantics=("parallel",),  # shard batch tiles across TCs (v7x)
        ),
    )(s_c, w1_c, b1, w2_c, b2, w3_c, b3p)

    return out[:batch, :action_dim]


def init_actor_params(key, state_dim, action_dim):
    """Deterministic init matching the PyTorch module: weights ~ N(0, 0.3), bias = 0.1.

    Weights are stored pre-transposed as [in, out] (PyTorch stores [out, in])."""
    k1, k2, k3 = jax.random.split(key, 3)
    std = 0.3
    return {
        "w1": jax.random.normal(k1, (state_dim, 64), jnp.float32) * std,
        "b1": jnp.full((1, 64), 0.1, jnp.float32),
        "w2": jax.random.normal(k2, (64, 32), jnp.float32) * std,
        "b2": jnp.full((1, 32), 0.1, jnp.float32),
        "w3": jax.random.normal(k3, (32, action_dim), jnp.float32) * std,
        "b3": jnp.full((1, action_dim), 0.1, jnp.float32),
    }


def actor_forward_ref(s, p, use_bf16=True):
    """Pure-JAX reference with the same precision choices as the kernel."""
    mm = jnp.bfloat16 if use_bf16 else jnp.float32

    def dot(a, b):
        return jnp.dot(a.astype(mm), b.astype(mm), preferred_element_type=jnp.float32)

    h1 = jnp.maximum(dot(s, p["w1"]) + p["b1"], 0.0)
    h2 = jnp.tanh(dot(h1, p["w2"]) + p["b2"])
    return jax.nn.sigmoid(dot(h2, p["w3"]) + p["b3"])


if __name__ == "__main__":
    key = jax.random.PRNGKey(0)
    k_params, k_in1, k_in2 = jax.random.split(key, 3)

    state_dim, action_dim = 16, 4
    params = init_actor_params(k_params, state_dim, action_dim)

    # Small per-step batch (matches typical DDPG actor usage).
    batch = 8
    s = jax.random.normal(k_in1, (batch, state_dim), jnp.float32)
    out = jax.block_until_ready(actor_forward(s, params))
    ref = actor_forward_ref(s, params)
    assert out.shape == (batch, action_dim)
    assert jnp.allclose(out, ref, atol=1e-3, rtol=1e-3)

    # Non-multiple-of-8 batch to exercise the batch-padding / tiled-grid path.
    batch2 = 70
    s2 = jax.random.normal(k_in2, (batch2, state_dim), jnp.float32)
    out2 = jax.block_until_ready(actor_forward(s2, params))
    ref2 = actor_forward_ref(s2, params)
    assert out2.shape == (batch2, action_dim)
    assert jnp.allclose(out2, ref2, atol=1e-3, rtol=1e-3)

    print("KERNEL_OK")
</pallas_src>

<mosaic_0001>
module attributes {stable_mosaic.version = 11 : i64} {
  func.func @_actor_kernel(%arg0: i32, %arg1: memref<8x16xbf16, #tpu.memory_space<vmem>>, %arg2: memref<16x64xbf16, #tpu.memory_space<vmem>>, %arg3: memref<1x64xf32, #tpu.memory_space<vmem>>, %arg4: memref<64x32xbf16, #tpu.memory_space<vmem>>, %arg5: memref<1x32xf32, #tpu.memory_space<vmem>>, %arg6: memref<32x128xbf16, #tpu.memory_space<vmem>>, %arg7: memref<1x128xf32, #tpu.memory_space<vmem>>, %arg8: memref<8x128xf32, #tpu.memory_space<vmem>>) attributes {dimension_semantics = [#tpu.dimension_semantics<parallel>], iteration_bounds = array<i64: 1>, scalar_prefetch = 0 : i64, scratch_operands = 0 : i64, tpu.core_type = #tpu.core_type<tc>, window_params = [{transform_indices = @transform_0, window_bounds = array<i64: 8, 16>}, {pipeline_mode = #tpu.pipeline_mode<synchronous>, transform_indices = @transform_1, window_bounds = array<i64: 16, 64>}, {pipeline_mode = #tpu.pipeline_mode<synchronous>, transform_indices = @transform_2, window_bounds = array<i64: 1, 64>}, {pipeline_mode = #tpu.pipeline_mode<synchronous>, transform_indices = @transform_3, window_bounds = array<i64: 64, 32>}, {pipeline_mode = #tpu.pipeline_mode<synchronous>, transform_indices = @transform_4, window_bounds = array<i64: 1, 32>}, {pipeline_mode = #tpu.pipeline_mode<synchronous>, transform_indices = @transform_5, window_bounds = array<i64: 32, 128>}, {pipeline_mode = #tpu.pipeline_mode<synchronous>, transform_indices = @transform_6, window_bounds = array<i64: 1, 128>}, {transform_indices = @transform_7, window_bounds = array<i64: 8, 128>}]} {
    %c0 = arith.constant 0 : index
    %c0_0 = arith.constant 0 : index
    %0 = vector.load %arg1[%c0, %c0_0] : memref<8x16xbf16, #tpu.memory_space<vmem>>, vector<8x16xbf16>
    %c0_1 = arith.constant 0 : index
    %c0_2 = arith.constant 0 : index
    %1 = vector.load %arg2[%c0_1, %c0_2] : memref<16x64xbf16, #tpu.memory_space<vmem>>, vector<16x64xbf16>
    %cst = arith.constant dense<0.000000e+00> : vector<8x64xf32>
    %2 = tpu.matmul %0, %1, %cst {dimension_numbers = #tpu.dot_dimension_numbers<[1], [0], [0], [1], [0, 0, 1, 1], [], []>} : vector<8x16xbf16>, vector<16x64xbf16>, vector<8x64xf32> -> vector<8x64xf32>
    %c0_3 = arith.constant 0 : index
    %c0_4 = arith.constant 0 : index
    %3 = vector.load %arg3[%c0_3, %c0_4] : memref<1x64xf32, #tpu.memory_space<vmem>>, vector<1x64xf32>
    %4 = vector.broadcast %3 : vector<1x64xf32> to vector<8x64xf32>
    %5 = arith.addf %2, %4 : vector<8x64xf32>
    %cst_5 = arith.constant 0.000000e+00 : f32
    %6 = vector.broadcast %cst_5 : f32 to vector<8x64xf32>
    %7 = arith.maximumf %5, %6 : vector<8x64xf32>
    %8 = arith.truncf %7 : vector<8x64xf32> to vector<8x64xbf16>
    %c0_6 = arith.constant 0 : index
    %c0_7 = arith.constant 0 : index
    %9 = vector.load %arg4[%c0_6, %c0_7] : memref<64x32xbf16, #tpu.memory_space<vmem>>, vector<64x32xbf16>
    %cst_8 = arith.constant dense<0.000000e+00> : vector<8x32xf32>
    %10 = tpu.matmul %8, %9, %cst_8 {dimension_numbers = #tpu.dot_dimension_numbers<[1], [0], [0], [1], [0, 0, 1, 1], [], []>} : vector<8x64xbf16>, vector<64x32xbf16>, vector<8x32xf32> -> vector<8x32xf32>
    %c0_9 = arith.constant 0 : index
    %c0_10 = arith.constant 0 : index
    %11 = vector.load %arg5[%c0_9, %c0_10] : memref<1x32xf32, #tpu.memory_space<vmem>>, vector<1x32xf32>
    %12 = vector.broadcast %11 : vector<1x32xf32> to vector<8x32xf32>
    %13 = arith.addf %10, %12 : vector<8x32xf32>
    %14 = math.tanh %13 : vector<8x32xf32>
    %15 = arith.truncf %14 : vector<8x32xf32> to vector<8x32xbf16>
    %c0_11 = arith.constant 0 : index
    %c0_12 = arith.constant 0 : index
    %16 = vector.load %arg6[%c0_11, %c0_12] : memref<32x128xbf16, #tpu.memory_space<vmem>>, vector<32x128xbf16>
    %cst_13 = arith.constant dense<0.000000e+00> : vector<8x128xf32>
    %17 = tpu.matmul %15, %16, %cst_13 {dimension_numbers = #tpu.dot_dimension_numbers<[1], [0], [0], [1], [0, 0, 1, 1], [], []>} : vector<8x32xbf16>, vector<32x128xbf16>, vector<8x128xf32> -> vector<8x128xf32>
    %c0_14 = arith.constant 0 : index
    %c0_15 = arith.constant 0 : index
    %18 = vector.load %arg7[%c0_14, %c0_15] : memref<1x128xf32, #tpu.memory_space<vmem>>, vector<1x128xf32>
    %19 = vector.broadcast %18 : vector<1x128xf32> to vector<8x128xf32>
    %20 = arith.addf %17, %19 : vector<8x128xf32>
    %21 = arith.negf %20 : vector<8x128xf32>
    %22 = math.exp %21 : vector<8x128xf32>
    %cst_16 = arith.constant 1.000000e+00 : f32
    %23 = vector.broadcast %cst_16 : f32 to vector<8x128xf32>
    %24 = arith.addf %23, %22 : vector<8x128xf32>
    %25 = arith.divf %23, %24 : vector<8x128xf32>
    %c0_17 = arith.constant 0 : index
    %c0_18 = arith.constant 0 : index
    %26 = vector.load %arg8[%c0_17, %c0_18] : memref<8x128xf32, #tpu.memory_space<vmem>>, vector<8x128xf32>
    tpu.vector_store %arg8[%c0_17, %c0_18], %25 {strides = array<i32>} : memref<8x128xf32, #tpu.memory_space<vmem>>, vector<8x128xf32>,
    return
  }
  func.func @transform_0(%arg0: i32) -> (i32, i32) {
    %c0_i32 = arith.constant 0 : i32
    %c0_i32_0 = arith.constant 0 : i32
    return %arg0, %c0_i32 : i32, i32
  }
  func.func @transform_1(%arg0: i32) -> (i32, i32) {
    %c0_i32 = arith.constant 0 : i32
    %c0_i32_0 = arith.constant 0 : i32
    %c0_i32_1 = arith.constant 0 : i32
    return %c0_i32, %c0_i32_0 : i32, i32
  }
  func.func @transform_2(%arg0: i32) -> (i32, i32) {
    %c0_i32 = arith.constant 0 : i32
    %c0_i32_0 = arith.constant 0 : i32
    %c0_i32_1 = arith.constant 0 : i32
    return %c0_i32, %c0_i32_0 : i32, i32
  }
  func.func @transform_3(%arg0: i32) -> (i32, i32) {
    %c0_i32 = arith.constant 0 : i32
    %c0_i32_0 = arith.constant 0 : i32
    %c0_i32_1 = arith.constant 0 : i32
    return %c0_i32, %c0_i32_0 : i32, i32
  }
  func.func @transform_4(%arg0: i32) -> (i32, i32) {
    %c0_i32 = arith.constant 0 : i32
    %c0_i32_0 = arith.constant 0 : i32
    %c0_i32_1 = arith.constant 0 : i32
    return %c0_i32, %c0_i32_0 : i32, i32
  }
  func.func @transform_5(%arg0: i32) -> (i32, i32) {
    %c0_i32 = arith.constant 0 : i32
    %c0_i32_0 = arith.constant 0 : i32
    %c0_i32_1 = arith.constant 0 : i32
    return %c0_i32, %c0_i32_0 : i32, i32
  }
  func.func @transform_6(%arg0: i32) -> (i32, i32) {
    %c0_i32 = arith.constant 0 : i32
    %c0_i32_0 = arith.constant 0 : i32
    %c0_i32_1 = arith.constant 0 : i32
    return %c0_i32, %c0_i32_0 : i32, i32
  }
  func.func @transform_7(%arg0: i32) -> (i32, i32) {
    %c0_i32 = arith.constant 0 : i32
    %c0_i32_0 = arith.constant 0 : i32
    return %arg0, %c0_i32 : i32, i32
  }
}

</mosaic_0001>

<llo_original>
// kernel: tpu_custom_call.1
$region0: #{tpu_custom_call.1}
  #allocation0 [shape = 'u32[]', space=smem, size = 0x4, offset = 0x4, fixed_abs, tag = 'smem constant byte address 0x4 - core index']
  #allocation1 [shape = 'u32[144,128]{1,0:T(1,128)}', space=vmem, size = 0x12000, scoped, tag = 'internal scratch']
  %s0 = inlined_call_operand.vmem [shape: bf16[8,16], index: 0, kind: input, shape index: {}]
  %s1 = inlined_call_operand.vmem [shape: bf16[16,64], index: 1, kind: input, shape index: {}]
  %s2 = inlined_call_operand.vmem [shape: f32[1,64], index: 2, kind: input, shape index: {}]
  %s3 = inlined_call_operand.vmem [shape: bf16[64,32], index: 3, kind: input, shape index: {}]
  %s4 = inlined_call_operand.vmem [shape: f32[1,32], index: 4, kind: input, shape index: {}]
  %s5 = inlined_call_operand.vmem [shape: bf16[32,128], index: 5, kind: input, shape index: {}]
  %s6 = inlined_call_operand.vmem [shape: f32[1,128], index: 6, kind: input, shape index: {}]
  %s7 = inlined_call_operand.hbm [shape: f32[8,128], index: 7, kind: output, shape index: {}]
  %s8 = sld [smem:[#allocation0]]
  $region38: #{tpu_custom_call.1} parent=0
    _
  %s10 = ssub.s32 1, %s8
  %s11 = scalar_select 0, %s10, %s8
  $region1: #{tpu_custom_call.1} parent=0
    #allocation2 [shape = 'u8[4096]{0}', space=vmem, size = 0x1000, scoped, tag = 'output window, operand 0, single buffered']
    #allocation3 [shape = 's32[1]{0}', space=sflag, size = 0x4, scoped, tag = 'scoped memory for tpu_custom_call.1']
    %12 = vsyncpa [#allocation3], 0
    // Predicated region
    $region2: #{tpu_custom_call.1} parent=1 // pred_check
      _
    $region3: #{tpu_custom_call.1} parent=1 // pred_check_branch
      %14 = sbr.rel (0) target = $region5
    $region4: #{tpu_custom_call.1} parent=1 // pred_region
      _
    $region5: #{tpu_custom_call.1} parent=1 // pred_fallthru
      _
    // Predicated region
    $region6: #{tpu_custom_call.1} parent=1 // pred_check
      _
    $region7: #{tpu_custom_call.1} parent=1 // pred_check_branch
      %16 = sbr.rel (0) target = $region9
    $region8: #{tpu_custom_call.1} parent=1 // pred_region
      _
    $region9: #{tpu_custom_call.1} parent=1 // pred_fallthru
      _
    // Predicated region
    $region10: #{tpu_custom_call.1} parent=1 // pred_check
      _
    $region11: #{tpu_custom_call.1} parent=1 // pred_check_branch
      %18 = sbr.rel (0) target = $region13
    $region12: #{tpu_custom_call.1} parent=1 // pred_region
      _
    $region13: #{tpu_custom_call.1} parent=1 // pred_fallthru
      _
    // Predicated region
    $region14: #{tpu_custom_call.1} parent=1 // pred_check
      _
    $region15: #{tpu_custom_call.1} parent=1 // pred_check_branch
      %20 = sbr.rel (0) target = $region17
    $region16: #{tpu_custom_call.1} parent=1 // pred_region
      _
    $region17: #{tpu_custom_call.1} parent=1 // pred_fallthru
      _
    // Predicated region
    $region18: #{tpu_custom_call.1} parent=1 // pred_check
      _
    $region19: #{tpu_custom_call.1} parent=1 // pred_check_branch
      %22 = sbr.rel (0) target = $region21
    $region20: #{tpu_custom_call.1} parent=1 // pred_region
      _
    $region21: #{tpu_custom_call.1} parent=1 // pred_fallthru
      _
    // Predicated region
    $region22: #{tpu_custom_call.1} parent=1 // pred_check
      _
    $region23: #{tpu_custom_call.1} parent=1 // pred_check_branch
      %24 = sbr.rel (0) target = $region25
    $region24: #{tpu_custom_call.1} parent=1 // pred_region
      _
    $region25: #{tpu_custom_call.1} parent=1 // pred_fallthru
      _
    // Predicated region
    $region26: #{tpu_custom_call.1} parent=1 // pred_check
      _
    $region27: #{tpu_custom_call.1} parent=1 // pred_check_branch
      %26 = sbr.rel (0) target = $region29
    $region28: #{tpu_custom_call.1} parent=1 // pred_region
      _
    $region29: #{tpu_custom_call.1} parent=1 // pred_fallthru
      _
    %v28 = vld [vmem:[%s0] sm:$0xf]
    %v29 = vld [vmem:[%s1] sm:$0xf]
    %v30 = vld [vmem:[%s1 + $0x4] sm:$0xf]
    %v31 = vld [vmem:[%s2] sm:$0x1]
    %v33 = vlaneseq
    %v34 = vshrl.u32 %v33, 7
    %v35 = vsub.s32 0, %v34
    %v36 = vrot.slane %v31, %v35
    %v40 = vunpack.c.l.b16 %v29
    %v41 = vunpack.c.l.b16 %v30
    %v42 = vpack.c.b16 %v41, %v40
    %vm44 = vcmask 130048
    %v46 = vsel %vm44, %v28, 0
    %48 = vmatprep.subr.bf16.mxu0 0
    %49 = vmatpush1.bf16.msra.mxu0 0
    %50 = vmatprep.subr.bf16.mxu0 0
    %51 = vmatpush1.bf16.msra.mxu0 0
    %52 = vmatprep.subr.bf16.mxu0 0
    %53 = vmatpush1.bf16.msra.mxu0 0
    %54 = vmatprep.subr.bf16.mxu0 0
    %55 = vmatpush1.bf16.msra.mxu0 0
    %56 = vmatprep.subr.bf16.mxu0 0
    %57 = vmatpush1.bf16.msra.mxu0 0
    %58 = vmatprep.subr.bf16.mxu0 0
    %59 = vmatpush1.bf16.msra.mxu0 0
    %60 = vmatprep.subr.bf16.mxu0 0
    %61 = vmatpush1.bf16.msra.mxu0 0
    %62 = vmatprep.subr.bf16.mxu0 0
    %63 = vmatpush1.bf16.msra.mxu0 %v42
    %64 = vmatprep.subr.bf16.mxu0 0
    %65 = vmatpush2.bf16.msra.mxu0 0
    %66 = vmatprep.subr.bf16.mxu0 0
    %67 = vmatpush2.bf16.msra.mxu0 0
    %68 = vmatprep.subr.bf16.mxu0 0
    %69 = vmatpush2.bf16.msra.mxu0 0
    %70 = vmatprep.subr.bf16.mxu0 0
    %71 = vmatpush2.bf16.msra.mxu0 0
    %72 = vmatprep.subr.bf16.mxu0 0
    %73 = vmatpush2.bf16.msra.mxu0 0
    %74 = vmatprep.subr.bf16.mxu0 0
    %75 = vmatpush2.bf16.msra.mxu0 0
    %76 = vmatprep.subr.bf16.mxu0 0
    %77 = vmatpush2.bf16.msra.mxu0 0
    %78 = vmatprep.subr.bf16.mxu0 0
    %79 = vmatpush2.bf16.msra.mxu0 0
    %80 = vmatprep.mubr.bf16.mxu0 0
    %81 = vmatmul.mubr.bf16.gmra.mxu0 %v46
    %v82 = vpop.f32.mrf.mxu0
    %v83 = vadd.f32 %v36, %v82
    %v84 = vpop.f32.mrf.mxu0
    %v85 = vpop.f32.mrf.mxu0
    %v86 = vpop.f32.mrf.mxu0
    %87 = vdwg.mxu0
    %v88 = vmax.f32 %v83, 0.0
    %v89 = vpack.c.bf16 %v88, %v88
    %v90 = vld [vmem:[%s3] sm:$0xf]
    %v91 = vld [vmem:[%s3 + $0x4] sm:$0xf]
    %v92 = vld [vmem:[%s3 + $0x8] sm:$0xf]
    %v93 = vld [vmem:[%s3 + $0xc] sm:$0xf]
    %v94 = vld [vmem:[%s3 + $0x10] sm:$0xf]
    %v95 = vld [vmem:[%s3 + $0x14] sm:$0xf]
    %v96 = vld [vmem:[%s3 + $0x18] sm:$0xf]
    %v97 = vld [vmem:[%s3 + $0x1c] sm:$0xf]
    %v98 = vld [vmem:[%s4] sm:$0x1]
    %v100 = vlaneseq
    %v101 = vshrl.u32 %v100, 7
    %v102 = vsub.s32 0, %v101
    %v103 = vrot.slane %v98, %v102
    %v113 = vunpack.c.l.b16 %v90
    %v114 = vunpack.c.l.b16 %v91
    %v115 = vunpack.c.l.b16 %v92
    %v116 = vunpack.c.l.b16 %v93
    %v117 = vunpack.c.l.b16 %v94
    %v118 = vunpack.c.l.b16 %v95
    %v119 = vunpack.c.l.b16 %v96
    %v120 = vunpack.c.l.b16 %v97
    %v121 = vpack.c.b16 %v114, %v113
    %v122 = vpack.c.b16 %v116, %v115
    %v123 = vpack.c.b16 %v118, %v117
    %v124 = vpack.c.b16 %v120, %v119
    %vm129 = vcmask 523264
    %v131 = vsel %vm129, %v89, 0
    %133 = vmatprep.subr.bf16.mxu0 0
    %134 = vmatpush1.bf16.msra.mxu0 0
    %135 = vmatprep.subr.bf16.mxu0 0
    %136 = vmatpush1.bf16.msra.mxu0 0
    %137 = vmatprep.subr.bf16.mxu0 0
    %138 = vmatpush1.bf16.msra.mxu0 0
    %139 = vmatprep.subr.bf16.mxu0 0
    %140 = vmatpush1.bf16.msra.mxu0 0
    %141 = vmatprep.subr.bf16.mxu0 0
    %142 = vmatpush1.bf16.msra.mxu0 %v124
    %143 = vmatprep.subr.bf16.mxu0 0
    %144 = vmatpush1.bf16.msra.mxu0 %v123
    %145 = vmatprep.subr.bf16.mxu0 0
    %146 = vmatpush1.bf16.msra.mxu0 %v122
    %147 = vmatprep.subr.bf16.mxu0 0
    %148 = vmatpush1.bf16.msra.mxu0 %v121
    %149 = vmatprep.subr.bf16.mxu0 0
    %150 = vmatpush2.bf16.msra.mxu0 0
    %151 = vmatprep.subr.bf16.mxu0 0
    %152 = vmatpush2.bf16.msra.mxu0 0
    %153 = vmatprep.subr.bf16.mxu0 0
    %154 = vmatpush2.bf16.msra.mxu0 0
    %155 = vmatprep.subr.bf16.mxu0 0
    %156 = vmatpush2.bf16.msra.mxu0 0
    %157 = vmatprep.subr.bf16.mxu0 0
    %158 = vmatpush2.bf16.msra.mxu0 0
    %159 = vmatprep.subr.bf16.mxu0 0
    %160 = vmatpush2.bf16.msra.mxu0 0
    %161 = vmatprep.subr.bf16.mxu0 0
    %162 = vmatpush2.bf16.msra.mxu0 0
    %163 = vmatprep.subr.bf16.mxu0 0
    %164 = vmatpush2.bf16.msra.mxu0 0
    %165 = vmatprep.mubr.bf16.mxu0 0
    %166 = vmatmul.mubr.bf16.gmra.mxu0 %v131
    %v167 = vpop.f32.mrf.mxu0
    %v168 = vadd.f32 %v103, %v167
    %v169 = vpop.f32.mrf.mxu0
    %v170 = vpop.f32.mrf.mxu0
    %v171 = vpop.f32.mrf.mxu0
    %172 = vdwg.mxu0
    %v173 = vtanh.pop %v168
    %v174 = vpack.c.bf16 %v173, %v173
    %v175 = vld [vmem:[%s5] sm:$0xf]
    %v176 = vld [vmem:[%s5 + $0x4] sm:$0xf]
    %v177 = vld [vmem:[%s5 + $0x8] sm:$0xf]
    %v178 = vld [vmem:[%s5 + $0xc] sm:$0xf]
    %v179 = vld [vmem:[%s6] sm:$0x1]
    %v181 = vlaneseq
    %v182 = vshrl.u32 %v181, 7
    %v183 = vsub.s32 0, %v182
    %v184 = vrot.slane %v179, %v183
    %v190 = vunpack.c.l.b16 %v175
    %v191 = vunpack.c.l.b16 %v176
    %v192 = vunpack.c.l.b16 %v177
    %v193 = vunpack.c.l.b16 %v178
    %v194 = vpack.c.b16 %v191, %v190
    %v195 = vpack.c.b16 %v193, %v192
    %vm198 = vcmask 261120
    %v200 = vsel %vm198, %v174, 0
    %202 = vmatprep.subr.bf16.mxu0 0
    %203 = vmatpush1.bf16.msra.mxu0 0
    %204 = vmatprep.subr.bf16.mxu0 0
    %205 = vmatpush1.bf16.msra.mxu0 0
    %206 = vmatprep.subr.bf16.mxu0 0
    %207 = vmatpush1.bf16.msra.mxu0 0
    %208 = vmatprep.subr.bf16.mxu0 0
    %209 = vmatpush1.bf16.msra.mxu0 0
    %210 = vmatprep.subr.bf16.mxu0 0
    %211 = vmatpush1.bf16.msra.mxu0 0
    %212 = vmatprep.subr.bf16.mxu0 0
    %213 = vmatpush1.bf16.msra.mxu0 0
    %214 = vmatprep.subr.bf16.mxu0 0
    %215 = vmatpush1.bf16.msra.mxu0 %v195
    %216 = vmatprep.subr.bf16.mxu0 0
    %217 = vmatpush1.bf16.msra.mxu0 %v194
    %218 = vmatprep.subr.bf16.mxu0 0
    %219 = vmatpush2.bf16.msra.mxu0 0
    %220 = vmatprep.subr.bf16.mxu0 0
    %221 = vmatpush2.bf16.msra.mxu0 0
    %222 = vmatprep.subr.bf16.mxu0 0
    %223 = vmatpush2.bf16.msra.mxu0 0
    %224 = vmatprep.subr.bf16.mxu0 0
    %225 = vmatpush2.bf16.msra.mxu0 0
    %226 = vmatprep.subr.bf16.mxu0 0
    %227 = vmatpush2.bf16.msra.mxu0 0
    %228 = vmatprep.subr.bf16.mxu0 0
    %229 = vmatpush2.bf16.msra.mxu0 0
    %230 = vmatprep.subr.bf16.mxu0 0
    %231 = vmatpush2.bf16.msra.mxu0 0
    %232 = vmatprep.subr.bf16.mxu0 0
    %233 = vmatpush2.bf16.msra.mxu0 0
    %234 = vmatprep.mubr.bf16.mxu0 0
    %235 = vmatmul.mubr.bf16.gmra.mxu0 %v200
    %v236 = vpop.f32.mrf.mxu0
    %v237 = vadd.f32 %v184, %v236
    %v238 = vpop.f32.mrf.mxu0
    %v239 = vpop.f32.mrf.mxu0
    %v240 = vpop.f32.mrf.mxu0
    %241 = vdwg.mxu0
    %v242 = vxor.u32 %v237, 2147483648
    %v243 = vmul.f32 %v242, 1.442695
    %v244 = vpow.pop %v243
    %v245 = vadd.f32 %v244, 1.0
    %v246 = vrcp.pop %v245
    %v247 = vmul.f32 1.0, %v246
    %248 = vst [vmem:[#allocation2] sm:$0xff] %v247
    // Predicated region
    $region30: #{tpu_custom_call.1} parent=1 // pred_check
      _
    $region31: #{tpu_custom_call.1} parent=1 // pred_check_branch
      %250 = sbr.rel (0) target = $region33
    $region32: #{tpu_custom_call.1} parent=1 // pred_region
      %s252 = ssub.s32 128, 128
      %253 = vsyncadd [#allocation3], %s252
      %s255 = sshll.u32 [#allocation2], 4
      %s256 = int_to_ptr.vmem [resolvable:$true] %s255
      %258 = dma.vmem_to_hbm [thread:$0]  %s256, 128, %s7, [#allocation3]
    $region33: #{tpu_custom_call.1} parent=1 // pred_fallthru
      _
    // Predicated region
    $region34: #{tpu_custom_call.1} parent=1 // pred_check
      _
    $region35: #{tpu_custom_call.1} parent=1 // pred_check_branch
      %260 = sbr.rel (0) target = $region37
    $region36: #{tpu_custom_call.1} parent=1 // pred_region
      %261 = dma.done [#allocation3], 128
    $region37: #{tpu_custom_call.1} parent=1 // pred_fallthru
      _
    %262 = vsyncpa [#allocation3], 1

</llo_original>
